<compile_context>
chip_gen: v6e
topology: v6e:2x2x1
jax: 0.10.0
libtpu: 0.0.40
codegen_flags: <defaults>
</compile_context>

<pallas_src>
import functools

import jax
import jax.numpy as jnp
from jax.experimental import pallas as pl
from jax.experimental.pallas import tpu as pltpu  # noqa: F401  (TPU backend assumed)

HIDDEN = 32          # args.encoder_embed_dim
NUM_NODES = 16       # graph size
BATCH = 2
NUM_GCN_LAYERS = 2   # args.ctx_layer
DROP_P = 0.2         # args.gcn_drop


# ---------------------------------------------------------------------------
# Fused kernel: L x GCN -> dropout + residual -> single-head GAT -> relu
# All operands are whole-array VMEM blocks (no grid; everything fits trivially).
# ---------------------------------------------------------------------------
def _graph_layer_kernel(x_ref, adj_gcn_ref, adj_gat_ref, gcn_w_ref, gcn_b_ref,
                        mask_ref, gat_w_ref, wa_src_ref, wa_dst_ref, gat_b_ref,
                        o_ref, *, num_layers):
    x = x_ref[...]                      # (B*N, H)
    adj_gcn = adj_gcn_ref[...]          # (B*N, B*N) block-diagonal
    residual = x

    # ---- GCN stack (statically unrolled) ----------------------------------
    for l in range(num_layers):
        xw = jnp.dot(x, gcn_w_ref[l], preferred_element_type=jnp.float32)
        agg = jnp.dot(adj_gcn, xw, preferred_element_type=jnp.float32)
        x = jnp.tanh(agg + gcn_b_ref[l])            # activation_fn == tanh

    # ---- dropout (pre-scaled keep mask from wrapper) + residual ------------
    h_in = x * mask_ref[...] + residual             # (B*N, H)

    # ---- single-head GAT ----------------------------------------------------
    h = jnp.dot(h_in, gat_w_ref[...], preferred_element_type=jnp.float32)
    # scores folded through W:  (h_in @ W) @ a.T == h_in @ (W @ a.T)  -> MXU only
    s_src = jnp.dot(h_in, wa_src_ref[...],
                    preferred_element_type=jnp.float32)               # (B*N, 1)
    # destination scores produced directly as a row -> no transpose needed
    s_dst_row = jax.lax.dot_general(
        wa_dst_ref[...], h_in, (((1,), (1,)), ((), ())),
        preferred_element_type=jnp.float32)                           # (1, B*N)

    e = s_src + s_dst_row                              # (B*N, B*N)
    e = jnp.where(e > 0, e, 0.2 * e)                   # LeakyReLU(0.2)
    e = jnp.where(adj_gat_ref[...] > 0.0, e, -1e9)     # adjacency mask
    e = e - jnp.max(e, axis=-1, keepdims=True)
    p = jnp.exp(e)
    # NOTE: pl.reciprocal(..., approx=True) is the TPU-optimal form; the plain
    # divide is kept so the kernel also runs under interpret mode.
    alpha = p / jnp.sum(p, axis=-1, keepdims=True)

    out = jnp.dot(alpha, h, preferred_element_type=jnp.float32) + gat_b_ref[...]
    o_ref[...] = jnp.maximum(out, 0.0)                 # activation_relu


def _dropout_keep_mask(key, shape, p, training):
    """Pre-scaled inverted-dropout keep mask (matches F.dropout semantics)."""
    if (not training) or p <= 0.0:
        return jnp.ones(shape, jnp.float32)
    u = jax.random.uniform(key, shape, dtype=jnp.float32)
    return jnp.where(u >= p, 1.0 / (1.0 - p), 0.0).astype(jnp.float32)


# ---------------------------------------------------------------------------
# GraphLayer.forward equivalent (single fused pallas_call)
# ---------------------------------------------------------------------------
@functools.partial(jax.jit, static_argnames=("edge_type", "training"))
def graph_layer_forward(g_reps, graph, params, dropout_key,
                        edge_type="forward", training=True):
    B, N, H = g_reps.shape
    BN = B * N

    adj_gcn = graph[0]
    if edge_type == "backward":
        adj_gcn = adj_gcn.T
    adj_gat = graph[-1]

    # Block-diagonal adjacencies so one matmul covers every batch element.
    eye_b = jnp.eye(B, dtype=jnp.float32)
    adj_gcn_blk = jnp.kron(eye_b, adj_gcn.astype(jnp.float32))     # (B*N, B*N)
    adj_gat_blk = jnp.kron(eye_b, adj_gat.astype(jnp.float32))     # (B*N, B*N)

    gcn_w = jnp.stack([w for (w, _) in params["gcn"]], axis=0)     # (L, H, H)
    gcn_b = jnp.stack([b for (_, b) in params["gcn"]], axis=0)     # (L, 1, H)

    gat_w = params["gat_w"]
    wa_src = gat_w @ params["gat_a_src"].T                         # (H, 1)
    wa_dst_row = params["gat_a_dst"] @ gat_w.T                     # (1, H)

    drop_mask = _dropout_keep_mask(dropout_key, (BN, H), DROP_P, training)

    kernel = functools.partial(_graph_layer_kernel,
                               num_layers=len(params["gcn"]))
    out = pl.pallas_call(
        kernel,
        out_shape=jax.ShapeDtypeStruct((BN, H), jnp.float32),
    )(g_reps.reshape(BN, H).astype(jnp.float32),
      adj_gcn_blk, adj_gat_blk, gcn_w, gcn_b, drop_mask,
      gat_w, wa_src, wa_dst_row, params["gat_b"])

    return out.reshape(B, N, H)


# ---------------------------------------------------------------------------
# Pure-JAX reference (same math, batched form) for a sanity check.
# ---------------------------------------------------------------------------
def _reference_forward(g_reps, graph, params, dropout_key,
                       edge_type="forward", training=True):
    B, N, H = g_reps.shape
    x = g_reps
    adj = graph[0]
    if edge_type == "backward":
        adj = adj.T
    for (w, b) in params["gcn"]:
        x = jnp.tanh(jnp.einsum("ij,bjh->bih", adj, x @ w) + b)
    mask = _dropout_keep_mask(dropout_key, (B * N, H), DROP_P, training)
    h_in = x * mask.reshape(B, N, H) + g_reps
    h = h_in @ params["gat_w"]
    s_src = h @ params["gat_a_src"].T                  # (B, N, 1)
    s_dst = h @ params["gat_a_dst"].T                  # (B, N, 1)
    e = s_src + jnp.swapaxes(s_dst, 1, 2)              # (B, N, N)
    e = jnp.where(e > 0, e, 0.2 * e)
    e = jnp.where(graph[-1][None] > 0.0, e, -1e9)
    e = e - e.max(-1, keepdims=True)
    p = jnp.exp(e)
    alpha = p / p.sum(-1, keepdims=True)
    out = jnp.einsum("bij,bjh->bih", alpha, h) + params["gat_b"]
    return jnp.maximum(out, 0.0)


def init_params(key):
    params = {"gcn": []}
    for _ in range(NUM_GCN_LAYERS):
        key, k1 = jax.random.split(key)
        w = jax.random.normal(k1, (HIDDEN, HIDDEN), jnp.float32) * 0.1
        b = jnp.zeros((1, HIDDEN), jnp.float32)
        params["gcn"].append((w, b))
    key, k1, k2, k3 = jax.random.split(key, 4)
    params["gat_w"] = jax.random.normal(k1, (HIDDEN, HIDDEN), jnp.float32) * 0.1
    params["gat_a_src"] = jax.random.normal(k2, (1, HIDDEN), jnp.float32) * 0.1
    params["gat_a_dst"] = jax.random.normal(k3, (1, HIDDEN), jnp.float32) * 0.1
    params["gat_b"] = jnp.zeros((1, HIDDEN), jnp.float32)
    return params


if __name__ == "__main__":
    key = jax.random.PRNGKey(0)
    key, kx, kg0, kg1, kd = jax.random.split(key, 5)

    g_reps = jax.random.normal(kx, (BATCH, NUM_NODES, HIDDEN), jnp.float32)

    # Binary adjacency matrices with self-loops (float32).
    adj0 = (jax.random.uniform(kg0, (NUM_NODES, NUM_NODES)) < 0.3).astype(jnp.float32)
    adj0 = jnp.maximum(adj0, jnp.eye(NUM_NODES, dtype=jnp.float32))
    adj1 = (jax.random.uniform(kg1, (NUM_NODES, NUM_NODES)) < 0.3).astype(jnp.float32)
    adj1 = jnp.maximum(adj1, jnp.eye(NUM_NODES, dtype=jnp.float32))
    graph = (adj0, adj1)

    params = init_params(key)

    out = graph_layer_forward(g_reps, graph, params, kd,
                              edge_type="forward", training=True)
    out = jax.block_until_ready(out)
    assert out.shape == (BATCH, NUM_NODES, HIDDEN)
    assert bool(jnp.all(jnp.isfinite(out)))

    ref = _reference_forward(g_reps, graph, params, kd,
                             edge_type="forward", training=True)
    assert bool(jnp.allclose(out, ref, atol=5e-2, rtol=5e-2)), \
        float(jnp.max(jnp.abs(out - ref)))

    print("KERNEL_OK")
</pallas_src>

<mosaic_0001>
module attributes {stable_mosaic.version = 11 : i64} {
  func.func @_graph_layer_kernel(%arg0: memref<32x32xf32, #tpu.memory_space<vmem>>, %arg1: memref<32x32xf32, #tpu.memory_space<vmem>>, %arg2: memref<32x32xf32, #tpu.memory_space<vmem>>, %arg3: memref<2x32x32xf32, #tpu.memory_space<vmem>>, %arg4: memref<2x1x32xf32, #tpu.memory_space<vmem>>, %arg5: memref<32x32xf32, #tpu.memory_space<vmem>>, %arg6: memref<32x32xf32, #tpu.memory_space<vmem>>, %arg7: memref<32x1xf32, #tpu.memory_space<vmem>>, %arg8: memref<1x32xf32, #tpu.memory_space<vmem>>, %arg9: memref<1x32xf32, #tpu.memory_space<vmem>>, %arg10: memref<32x32xf32, #tpu.memory_space<vmem>>) attributes {dimension_semantics = [], scalar_prefetch = 0 : i64, scratch_operands = 0 : i64, tpu.core_type = #tpu.core_type<tc>} {
    %c0 = arith.constant 0 : index
    %c0_0 = arith.constant 0 : index
    %0 = vector.load %arg0[%c0, %c0_0] : memref<32x32xf32, #tpu.memory_space<vmem>>, vector<32x32xf32>
    %c0_1 = arith.constant 0 : index
    %c0_2 = arith.constant 0 : index
    %1 = vector.load %arg1[%c0_1, %c0_2] : memref<32x32xf32, #tpu.memory_space<vmem>>, vector<32x32xf32>
    %c0_3 = arith.constant 0 : index
    %c0_4 = arith.constant 0 : index
    %c0_5 = arith.constant 0 : index
    %2 = vector.load %arg3[%c0_3, %c0_4, %c0_5] : memref<2x32x32xf32, #tpu.memory_space<vmem>>, vector<1x32x32xf32>
    %3 = vector.shape_cast %2 : vector<1x32x32xf32> to vector<32x32xf32>
    %cst = arith.constant dense<0.000000e+00> : vector<32x32xf32>
    %4 = tpu.matmul %0, %3, %cst {dimension_numbers = #tpu.dot_dimension_numbers<[1], [0], [0], [1], [0, 0, 1, 1], [], []>} : vector<32x32xf32>, vector<32x32xf32>, vector<32x32xf32> -> vector<32x32xf32>
    %cst_6 = arith.constant dense<0.000000e+00> : vector<32x32xf32>
    %5 = tpu.matmul %1, %4, %cst_6 {dimension_numbers = #tpu.dot_dimension_numbers<[1], [0], [0], [1], [0, 0, 1, 1], [], []>} : vector<32x32xf32>, vector<32x32xf32>, vector<32x32xf32> -> vector<32x32xf32>
    %c0_7 = arith.constant 0 : index
    %c0_8 = arith.constant 0 : index
    %c0_9 = arith.constant 0 : index
    %6 = vector.load %arg4[%c0_7, %c0_8, %c0_9] : memref<2x1x32xf32, #tpu.memory_space<vmem>>, vector<1x1x32xf32>
    %7 = vector.shape_cast %6 : vector<1x1x32xf32> to vector<1x32xf32>
    %8 = vector.broadcast %7 : vector<1x32xf32> to vector<32x32xf32>
    %9 = arith.addf %5, %8 : vector<32x32xf32>
    %10 = math.tanh %9 : vector<32x32xf32>
    %c1 = arith.constant 1 : index
    %c0_10 = arith.constant 0 : index
    %c0_11 = arith.constant 0 : index
    %11 = vector.load %arg3[%c1, %c0_10, %c0_11] : memref<2x32x32xf32, #tpu.memory_space<vmem>>, vector<1x32x32xf32>
    %12 = vector.shape_cast %11 : vector<1x32x32xf32> to vector<32x32xf32>
    %cst_12 = arith.constant dense<0.000000e+00> : vector<32x32xf32>
    %13 = tpu.matmul %10, %12, %cst_12 {dimension_numbers = #tpu.dot_dimension_numbers<[1], [0], [0], [1], [0, 0, 1, 1], [], []>} : vector<32x32xf32>, vector<32x32xf32>, vector<32x32xf32> -> vector<32x32xf32>
    %cst_13 = arith.constant dense<0.000000e+00> : vector<32x32xf32>
    %14 = tpu.matmul %1, %13, %cst_13 {dimension_numbers = #tpu.dot_dimension_numbers<[1], [0], [0], [1], [0, 0, 1, 1], [], []>} : vector<32x32xf32>, vector<32x32xf32>, vector<32x32xf32> -> vector<32x32xf32>
    %c1_14 = arith.constant 1 : index
    %c0_15 = arith.constant 0 : index
    %c0_16 = arith.constant 0 : index
    %15 = vector.load %arg4[%c1_14, %c0_15, %c0_16] : memref<2x1x32xf32, #tpu.memory_space<vmem>>, vector<1x1x32xf32>
    %16 = vector.shape_cast %15 : vector<1x1x32xf32> to vector<1x32xf32>
    %17 = vector.broadcast %16 : vector<1x32xf32> to vector<32x32xf32>
    %18 = arith.addf %14, %17 : vector<32x32xf32>
    %19 = math.tanh %18 : vector<32x32xf32>
    %c0_17 = arith.constant 0 : index
    %c0_18 = arith.constant 0 : index
    %20 = vector.load %arg5[%c0_17, %c0_18] : memref<32x32xf32, #tpu.memory_space<vmem>>, vector<32x32xf32>
    %21 = arith.mulf %19, %20 : vector<32x32xf32>
    %22 = arith.addf %21, %0 : vector<32x32xf32>
    %c0_19 = arith.constant 0 : index
    %c0_20 = arith.constant 0 : index
    %23 = vector.load %arg6[%c0_19, %c0_20] : memref<32x32xf32, #tpu.memory_space<vmem>>, vector<32x32xf32>
    %cst_21 = arith.constant dense<0.000000e+00> : vector<32x32xf32>
    %24 = tpu.matmul %22, %23, %cst_21 {dimension_numbers = #tpu.dot_dimension_numbers<[1], [0], [0], [1], [0, 0, 1, 1], [], []>} : vector<32x32xf32>, vector<32x32xf32>, vector<32x32xf32> -> vector<32x32xf32>
    %c0_22 = arith.constant 0 : index
    %c0_23 = arith.constant 0 : index
    %25 = vector.load %arg7[%c0_22, %c0_23] : memref<32x1xf32, #tpu.memory_space<vmem>>, vector<32x1xf32>
    %cst_24 = arith.constant dense<0.000000e+00> : vector<32x1xf32>
    %26 = tpu.matmul %22, %25, %cst_24 {dimension_numbers = #tpu.dot_dimension_numbers<[1], [0], [0], [1], [0, 0, 1, 1], [], []>} : vector<32x32xf32>, vector<32x1xf32>, vector<32x1xf32> -> vector<32x1xf32>
    %c0_25 = arith.constant 0 : index
    %c0_26 = arith.constant 0 : index
    %27 = vector.load %arg8[%c0_25, %c0_26] : memref<1x32xf32, #tpu.memory_space<vmem>>, vector<1x32xf32>
    %cst_27 = arith.constant dense<0.000000e+00> : vector<1x32xf32>
    %28 = tpu.matmul %27, %22, %cst_27 {dimension_numbers = #tpu.dot_dimension_numbers<[1], [1], [0], [0], [0, 0, 1, 0], [], []>} : vector<1x32xf32>, vector<32x32xf32>, vector<1x32xf32> -> vector<1x32xf32>
    %29 = vector.broadcast %26 : vector<32x1xf32> to vector<32x32xf32>
    %30 = vector.broadcast %28 : vector<1x32xf32> to vector<32x32xf32>
    %31 = arith.addf %29, %30 : vector<32x32xf32>
    %cst_28 = arith.constant 0.000000e+00 : f32
    %32 = vector.broadcast %cst_28 : f32 to vector<32x32xf32>
    %33 = arith.cmpf ogt, %31, %32 : vector<32x32xf32>
    %cst_29 = arith.constant 2.000000e-01 : f32
    %34 = vector.broadcast %cst_29 : f32 to vector<32x32xf32>
    %35 = arith.mulf %34, %31 : vector<32x32xf32>
    %36 = arith.select %33, %31, %35 : vector<32x32xi1>, vector<32x32xf32>
    %c0_30 = arith.constant 0 : index
    %c0_31 = arith.constant 0 : index
    %37 = vector.load %arg2[%c0_30, %c0_31] : memref<32x32xf32, #tpu.memory_space<vmem>>, vector<32x32xf32>
    %cst_32 = arith.constant 0.000000e+00 : f32
    %38 = vector.broadcast %cst_32 : f32 to vector<32x32xf32>
    %39 = arith.cmpf ogt, %37, %38 : vector<32x32xf32>
    %cst_33 = arith.constant -1.000000e+09 : f32
    %40 = vector.broadcast %cst_33 : f32 to vector<32x32xf32>
    %41 = arith.select %39, %36, %40 : vector<32x32xi1>, vector<32x32xf32>
    %cst_34 = arith.constant dense<0xFF800000> : vector<32xf32>
    %42 = vector.multi_reduction <maximumf>, %41, %cst_34 [1] : vector<32x32xf32> to vector<32xf32>
    %43 = vector.shape_cast %42 : vector<32xf32> to vector<32x1xf32>
    %44 = vector.broadcast %43 : vector<32x1xf32> to vector<32x32xf32>
    %45 = arith.subf %41, %44 : vector<32x32xf32>
    %46 = math.exp %45 : vector<32x32xf32>
    %cst_35 = arith.constant dense<0.000000e+00> : vector<32xf32>
    %47 = vector.multi_reduction <add>, %46, %cst_35 [1] : vector<32x32xf32> to vector<32xf32>
    %48 = vector.shape_cast %47 : vector<32xf32> to vector<32x1xf32>
    %49 = vector.broadcast %48 : vector<32x1xf32> to vector<32x32xf32>
    %50 = arith.divf %46, %49 : vector<32x32xf32>
    %cst_36 = arith.constant dense<0.000000e+00> : vector<32x32xf32>
    %51 = tpu.matmul %50, %24, %cst_36 {dimension_numbers = #tpu.dot_dimension_numbers<[1], [0], [0], [1], [0, 0, 1, 1], [], []>} : vector<32x32xf32>, vector<32x32xf32>, vector<32x32xf32> -> vector<32x32xf32>
    %c0_37 = arith.constant 0 : index
    %c0_38 = arith.constant 0 : index
    %52 = vector.load %arg9[%c0_37, %c0_38] : memref<1x32xf32, #tpu.memory_space<vmem>>, vector<1x32xf32>
    %53 = vector.broadcast %52 : vector<1x32xf32> to vector<32x32xf32>
    %54 = arith.addf %51, %53 : vector<32x32xf32>
    %cst_39 = arith.constant 0.000000e+00 : f32
    %55 = vector.broadcast %cst_39 : f32 to vector<32x32xf32>
    %56 = arith.maximumf %54, %55 : vector<32x32xf32>
    %c0_40 = arith.constant 0 : index
    %c0_41 = arith.constant 0 : index
    %57 = vector.load %arg10[%c0_40, %c0_41] : memref<32x32xf32, #tpu.memory_space<vmem>>, vector<32x32xf32>
    tpu.vector_store %arg10[%c0_40, %c0_41], %56 {strides = array<i32>} : memref<32x32xf32, #tpu.memory_space<vmem>>, vector<32x32xf32>,
    return
  }
}

</mosaic_0001>

<llo_original>
// kernel: graph_layer_forward.1
$region0: #{graph_layer_forward.1}
  #allocation0 [shape = 'u32[]', space=smem, size = 0x4, offset = 0x4, fixed_abs, tag = 'smem constant byte address 0x4 - core index']
  #allocation1 [shape = 'u32[144,128]{1,0:T(1,128)}', space=vmem, size = 0x12000, scoped, tag = 'internal scratch']
  %s0 = inlined_call_operand.vmem [shape: f32[32,32], index: 0, kind: input, shape index: {}]
  %s1 = inlined_call_operand.vmem [shape: f32[32,32], index: 1, kind: input, shape index: {}]
  %s2 = inlined_call_operand.vmem [shape: f32[32,32], index: 2, kind: input, shape index: {}]
  %s3 = inlined_call_operand.vmem [shape: f32[2,32,32], index: 3, kind: input, shape index: {}]
  %s4 = inlined_call_operand.vmem [shape: f32[2,1,32], index: 4, kind: input, shape index: {}]
  %s5 = inlined_call_operand.vmem [shape: f32[32,32], index: 5, kind: input, shape index: {}]
  %s6 = inlined_call_operand.vmem [shape: f32[32,32], index: 6, kind: input, shape index: {}]
  %s7 = inlined_call_operand.vmem [shape: f32[32,1], index: 7, kind: input, shape index: {}]
  %s8 = inlined_call_operand.vmem [shape: f32[1,32], index: 8, kind: input, shape index: {}]
  %s9 = inlined_call_operand.vmem [shape: f32[1,32], index: 9, kind: input, shape index: {}]
  %s10 = inlined_call_operand.hbm [shape: f32[32,32], index: 10, kind: output, shape index: {}]
  %s11 = sld [smem:[#allocation0]]
  $region50: #{graph_layer_forward.1} parent=0
    _
  %s13 = ssub.s32 1, %s11
  %s14 = scalar_select 0, %s13, %s11
  $region1: #{graph_layer_forward.1} parent=0
    #allocation2 [shape = 'u8[16384]{0}', space=vmem, size = 0x4000, scoped, tag = 'output window, operand 0, single buffered']
    #allocation3 [shape = 's32[1]{0}', space=sflag, size = 0x4, scoped, tag = 'scoped memory for graph_layer_forward.1']
    %15 = vsyncpa [#allocation3], 0
    // Predicated region
    $region2: #{graph_layer_forward.1} parent=1 // pred_check
      _
    $region3: #{graph_layer_forward.1} parent=1 // pred_check_branch
      %17 = sbr.rel (0) target = $region5
    $region4: #{graph_layer_forward.1} parent=1 // pred_region
      _
    $region5: #{graph_layer_forward.1} parent=1 // pred_fallthru
      _
    // Predicated region
    $region6: #{graph_layer_forward.1} parent=1 // pred_check
      _
    $region7: #{graph_layer_forward.1} parent=1 // pred_check_branch
      %19 = sbr.rel (0) target = $region9
    $region8: #{graph_layer_forward.1} parent=1 // pred_region
      _
    $region9: #{graph_layer_forward.1} parent=1 // pred_fallthru
      _
    // Predicated region
    $region10: #{graph_layer_forward.1} parent=1 // pred_check
      _
    $region11: #{graph_layer_forward.1} parent=1 // pred_check_branch
      %21 = sbr.rel (0) target = $region13
    $region12: #{graph_layer_forward.1} parent=1 // pred_region
      _
    $region13: #{graph_layer_forward.1} parent=1 // pred_fallthru
      _
    // Predicated region
    $region14: #{graph_layer_forward.1} parent=1 // pred_check
      _
    $region15: #{graph_layer_forward.1} parent=1 // pred_check_branch
      %23 = sbr.rel (0) target = $region17
    $region16: #{graph_layer_forward.1} parent=1 // pred_region
      _
    $region17: #{graph_layer_forward.1} parent=1 // pred_fallthru
      _
    // Predicated region
    $region18: #{graph_layer_forward.1} parent=1 // pred_check
      _
    $region19: #{graph_layer_forward.1} parent=1 // pred_check_branch
      %25 = sbr.rel (0) target = $region21
    $region20: #{graph_layer_forward.1} parent=1 // pred_region
      _
    $region21: #{graph_layer_forward.1} parent=1 // pred_fallthru
      _
    // Predicated region
    $region22: #{graph_layer_forward.1} parent=1 // pred_check
      _
    $region23: #{graph_layer_forward.1} parent=1 // pred_check_branch
      %27 = sbr.rel (0) target = $region25
    $region24: #{graph_layer_forward.1} parent=1 // pred_region
      _
    $region25: #{graph_layer_forward.1} parent=1 // pred_fallthru
      _
    // Predicated region
    $region26: #{graph_layer_forward.1} parent=1 // pred_check
      _
    $region27: #{graph_layer_forward.1} parent=1 // pred_check_branch
      %29 = sbr.rel (0) target = $region29
    $region28: #{graph_layer_forward.1} parent=1 // pred_region
      _
    $region29: #{graph_layer_forward.1} parent=1 // pred_fallthru
      _
    // Predicated region
    $region30: #{graph_layer_forward.1} parent=1 // pred_check
      _
    $region31: #{graph_layer_forward.1} parent=1 // pred_check_branch
      %31 = sbr.rel (0) target = $region33
    $region32: #{graph_layer_forward.1} parent=1 // pred_region
      _
    $region33: #{graph_layer_forward.1} parent=1 // pred_fallthru
      _
    // Predicated region
    $region34: #{graph_layer_forward.1} parent=1 // pred_check
      _
    $region35: #{graph_layer_forward.1} parent=1 // pred_check_branch
      %33 = sbr.rel (0) target = $region37
    $region36: #{graph_layer_forward.1} parent=1 // pred_region
      _
    $region37: #{graph_layer_forward.1} parent=1 // pred_fallthru
      _
    // Predicated region
    $region38: #{graph_layer_forward.1} parent=1 // pred_check
      _
    $region39: #{graph_layer_forward.1} parent=1 // pred_check_branch
      %35 = sbr.rel (0) target = $region41
    $region40: #{graph_layer_forward.1} parent=1 // pred_region
      _
    $region41: #{graph_layer_forward.1} parent=1 // pred_fallthru
      _
    %v36 = vld [vmem:[%s0] sm:$0xff]
    %v37 = vld [vmem:[%s0 + $0x8] sm:$0xff]
    %v38 = vld [vmem:[%s0 + $0x10] sm:$0xff]
    %v39 = vld [vmem:[%s0 + $0x18] sm:$0xff]
    %v40 = vld [vmem:[%s1] sm:$0xff]
    %v41 = vld [vmem:[%s1 + $0x8] sm:$0xff]
    %v42 = vld [vmem:[%s1 + $0x10] sm:$0xff]
    %v43 = vld [vmem:[%s1 + $0x18] sm:$0xff]
    %v44 = vld [vmem:[%s3] sm:$0xff]
    %v45 = vld [vmem:[%s3 + $0x8] sm:$0xff]
    %v46 = vld [vmem:[%s3 + $0x10] sm:$0xff]
    %v47 = vld [vmem:[%s3 + $0x18] sm:$0xff]
    %vm48 = vcmask 261120
    %v50 = vsel %vm48, %v36, 0
    %v53 = vsel %vm48, %v37, 0
    %v56 = vsel %vm48, %v38, 0
    %v59 = vsel %vm48, %v39, 0
    %61 = vmatprep.subr.mxu0 0.0
    %62 = vmatpush1.msra.mxu0 0.0
    %63 = vmatprep.subr.mxu0 0.0
    %64 = vmatpush1.msra.mxu0 0.0
    %65 = vmatprep.subr.mxu0 0.0
    %66 = vmatpush1.msra.mxu0 0.0
    %67 = vmatprep.subr.mxu0 0.0
    %68 = vmatpush1.msra.mxu0 0.0
    %69 = vmatprep.subr.mxu0 0.0
    %70 = vmatpush1.msra.mxu0 0.0
    %71 = vmatprep.subr.mxu0 0.0
    %72 = vmatpush1.msra.mxu0 0.0
    %73 = vmatprep.subr.mxu0 0.0
    %74 = vmatpush1.msra.mxu0 0.0
    %75 = vmatprep.subr.mxu0 0.0
    %76 = vmatpush1.msra.mxu0 0.0
    %77 = vmatprep.subr.mxu0 0.0
    %78 = vmatpush1.msra.mxu0 0.0
    %79 = vmatprep.subr.mxu0 0.0
    %80 = vmatpush1.msra.mxu0 0.0
    %81 = vmatprep.subr.mxu0 0.0
    %82 = vmatpush1.msra.mxu0 0.0
    %83 = vmatprep.subr.mxu0 0.0
    %84 = vmatpush1.msra.mxu0 0.0
    %85 = vmatprep.subr.mxu0 0.0
    %86 = vmatpush1.msra.mxu0 %v47
    %87 = vmatprep.subr.mxu0 0.0
    %88 = vmatpush1.msra.mxu0 %v46
    %89 = vmatprep.subr.mxu0 0.0
    %90 = vmatpush1.msra.mxu0 %v45
    %91 = vmatprep.subr.mxu0 0.0
    %92 = vmatpush1.msra.mxu0 %v44
    %93 = vmatprep.subr.mxu0 0.0
    %94 = vmatpush2.msra.mxu0 0.0
    %95 = vmatprep.subr.mxu0 0.0
    %96 = vmatpush2.msra.mxu0 0.0
    %97 = vmatprep.subr.mxu0 0.0
    %98 = vmatpush2.msra.mxu0 0.0
    %99 = vmatprep.subr.mxu0 0.0
    %100 = vmatpush2.msra.mxu0 0.0
    %101 = vmatprep.subr.mxu0 0.0
    %102 = vmatpush2.msra.mxu0 0.0
    %103 = vmatprep.subr.mxu0 0.0
    %104 = vmatpush2.msra.mxu0 0.0
    %105 = vmatprep.subr.mxu0 0.0
    %106 = vmatpush2.msra.mxu0 0.0
    %107 = vmatprep.subr.mxu0 0.0
    %108 = vmatpush2.msra.mxu0 0.0
    %109 = vmatprep.subr.mxu0 0.0
    %110 = vmatpush2.msra.mxu0 0.0
    %111 = vmatprep.subr.mxu0 0.0
    %112 = vmatpush2.msra.mxu0 0.0
    %113 = vmatprep.subr.mxu0 0.0
    %114 = vmatpush2.msra.mxu0 0.0
    %115 = vmatprep.subr.mxu0 0.0
    %116 = vmatpush2.msra.mxu0 0.0
    %117 = vmatprep.subr.mxu0 0.0
    %118 = vmatpush2.msra.mxu0 0.0
    %119 = vmatprep.subr.mxu0 0.0
    %120 = vmatpush2.msra.mxu0 0.0
    %121 = vmatprep.subr.mxu0 0.0
    %122 = vmatpush2.msra.mxu0 0.0
    %123 = vmatprep.subr.mxu0 0.0
    %124 = vmatpush2.msra.mxu0 0.0
    %125 = vmatprep.mubr.f32.mxu0 0.0
    %126 = vmatmul.mubr.f32.gmra.mxu0 %v50
    %v127 = vpop.f32.mrf.mxu0
    %v128 = vadd.f32 0.0, %v127
    %v129 = vpop.f32.mrf.mxu0
    %130 = vmatprep.mubr.f32.mxu0 0.0
    %131 = vmatmul.mubr.f32.gmra.mxu0 %v53
    %v132 = vpop.f32.mrf.mxu0
    %v133 = vadd.f32 0.0, %v132
    %v134 = vpop.f32.mrf.mxu0
    %135 = vmatprep.mubr.f32.mxu0 0.0
    %136 = vmatmul.mubr.f32.gmra.mxu0 %v56
    %v137 = vpop.f32.mrf.mxu0
    %v138 = vadd.f32 0.0, %v137
    %v139 = vpop.f32.mrf.mxu0
    %140 = vmatprep.mubr.f32.mxu0 0.0
    %141 = vmatmul.mubr.f32.gmra.mxu0 %v59
    %v142 = vpop.f32.mrf.mxu0
    %v143 = vadd.f32 0.0, %v142
    %v144 = vpop.f32.mrf.mxu0
    %145 = vdwg.mxu0
    %v146 = vld [vmem:[%s4] sm:$0x1]
    %v148 = vlaneseq
    %v149 = vshrl.u32 %v148, 7
    %v150 = vsub.s32 0, %v149
    %v151 = vrot.slane %v146, %v150
    %v154 = vsel %vm48, %v40, 0
    %v157 = vsel %vm48, %v41, 0
    %v160 = vsel %vm48, %v42, 0
    %v163 = vsel %vm48, %v43, 0
    %165 = vmatprep.subr.mxu0 0.0
    %166 = vmatpush1.msra.mxu0 0.0
    %167 = vmatprep.subr.mxu0 0.0
    %168 = vmatpush1.msra.mxu0 0.0
    %169 = vmatprep.subr.mxu0 0.0
    %170 = vmatpush1.msra.mxu0 0.0
    %171 = vmatprep.subr.mxu0 0.0
    %172 = vmatpush1.msra.mxu0 0.0
    %173 = vmatprep.subr.mxu0 0.0
    %174 = vmatpush1.msra.mxu0 0.0
    %175 = vmatprep.subr.mxu0 0.0
    %176 = vmatpush1.msra.mxu0 0.0
    %177 = vmatprep.subr.mxu0 0.0
    %178 = vmatpush1.msra.mxu0 0.0
    %179 = vmatprep.subr.mxu0 0.0
    %180 = vmatpush1.msra.mxu0 0.0
    %181 = vmatprep.subr.mxu0 0.0
    %182 = vmatpush1.msra.mxu0 0.0
    %183 = vmatprep.subr.mxu0 0.0
    %184 = vmatpush1.msra.mxu0 0.0
    %185 = vmatprep.subr.mxu0 0.0
    %186 = vmatpush1.msra.mxu0 0.0
    %187 = vmatprep.subr.mxu0 0.0
    %188 = vmatpush1.msra.mxu0 0.0
    %189 = vmatprep.subr.mxu0 0.0
    %190 = vmatpush1.msra.mxu0 %v143
    %191 = vmatprep.subr.mxu0 0.0
    %192 = vmatpush1.msra.mxu0 %v138
    %193 = vmatprep.subr.mxu0 0.0
    %194 = vmatpush1.msra.mxu0 %v133
    %195 = vmatprep.subr.mxu0 0.0
    %196 = vmatpush1.msra.mxu0 %v128
    %197 = vmatprep.subr.mxu0 0.0
    %198 = vmatpush2.msra.mxu0 0.0
    %199 = vmatprep.subr.mxu0 0.0
    %200 = vmatpush2.msra.mxu0 0.0
    %201 = vmatprep.subr.mxu0 0.0
    %202 = vmatpush2.msra.mxu0 0.0
    %203 = vmatprep.subr.mxu0 0.0
    %204 = vmatpush2.msra.mxu0 0.0
    %205 = vmatprep.subr.mxu0 0.0
    %206 = vmatpush2.msra.mxu0 0.0
    %207 = vmatprep.subr.mxu0 0.0
    %208 = vmatpush2.msra.mxu0 0.0
    %209 = vmatprep.subr.mxu0 0.0
    %210 = vmatpush2.msra.mxu0 0.0
    %211 = vmatprep.subr.mxu0 0.0
    %212 = vmatpush2.msra.mxu0 0.0
    %213 = vmatprep.subr.mxu0 0.0
    %214 = vmatpush2.msra.mxu0 0.0
    %215 = vmatprep.subr.mxu0 0.0
    %216 = vmatpush2.msra.mxu0 0.0
    %217 = vmatprep.subr.mxu0 0.0
    %218 = vmatpush2.msra.mxu0 0.0
    %219 = vmatprep.subr.mxu0 0.0
    %220 = vmatpush2.msra.mxu0 0.0
    %221 = vmatprep.subr.mxu0 0.0
    %222 = vmatpush2.msra.mxu0 0.0
    %223 = vmatprep.subr.mxu0 0.0
    %224 = vmatpush2.msra.mxu0 0.0
    %225 = vmatprep.subr.mxu0 0.0
    %226 = vmatpush2.msra.mxu0 0.0
    %227 = vmatprep.subr.mxu0 0.0
    %228 = vmatpush2.msra.mxu0 0.0
    %229 = vmatprep.mubr.f32.mxu0 0.0
    %230 = vmatmul.mubr.f32.gmra.mxu0 %v154
    %v231 = vpop.f32.mrf.mxu0
    %v232 = vadd.f32 %v151, %v231
    %v233 = vpop.f32.mrf.mxu0
    %234 = vmatprep.mubr.f32.mxu0 0.0
    %235 = vmatmul.mubr.f32.gmra.mxu0 %v157
    %v236 = vpop.f32.mrf.mxu0
    %v237 = vadd.f32 %v151, %v236
    %v238 = vpop.f32.mrf.mxu0
    %239 = vmatprep.mubr.f32.mxu0 0.0
    %240 = vmatmul.mubr.f32.gmra.mxu0 %v160
    %v241 = vpop.f32.mrf.mxu0
    %v242 = vadd.f32 %v151, %v241
    %v243 = vpop.f32.mrf.mxu0
    %244 = vmatprep.mubr.f32.mxu0 0.0
    %245 = vmatmul.mubr.f32.gmra.mxu0 %v163
    %v246 = vpop.f32.mrf.mxu0
    %v247 = vadd.f32 %v151, %v246
    %v248 = vpop.f32.mrf.mxu0
    %249 = vdwg.mxu0
    %v250 = vtanh.pop %v232
    %v251 = vtanh.pop %v237
    %v252 = vtanh.pop %v242
    %v253 = vtanh.pop %v247
    %s254 = scalar_lea.vmem %s3, 32
    %v255 = vld [vmem:[%s254] sm:$0xff]
    %v256 = vld [vmem:[%s254 + $0x8] sm:$0xff]
    %v257 = vld [vmem:[%s254 + $0x10] sm:$0xff]
    %v258 = vld [vmem:[%s254 + $0x18] sm:$0xff]
    %v260 = vsel %vm48, %v250, 0
    %v263 = vsel %vm48, %v251, 0
    %v266 = vsel %vm48, %v252, 0
    %v269 = vsel %vm48, %v253, 0
    %271 = vmatprep.subr.mxu0 0.0
    %272 = vmatpush1.msra.mxu0 0.0
    %273 = vmatprep.subr.mxu0 0.0
    %274 = vmatpush1.msra.mxu0 0.0
    %275 = vmatprep.subr.mxu0 0.0
    %276 = vmatpush1.msra.mxu0 0.0
    %277 = vmatprep.subr.mxu0 0.0
    %278 = vmatpush1.msra.mxu0 0.0
    %279 = vmatprep.subr.mxu0 0.0
    %280 = vmatpush1.msra.mxu0 0.0
    %281 = vmatprep.subr.mxu0 0.0
    %282 = vmatpush1.msra.mxu0 0.0
    %283 = vmatprep.subr.mxu0 0.0
    %284 = vmatpush1.msra.mxu0 0.0
    %285 = vmatprep.subr.mxu0 0.0
    %286 = vmatpush1.msra.mxu0 0.0
    %287 = vmatprep.subr.mxu0 0.0
    %288 = vmatpush1.msra.mxu0 0.0
    %289 = vmatprep.subr.mxu0 0.0
    %290 = vmatpush1.msra.mxu0 0.0
    %291 = vmatprep.subr.mxu0 0.0
    %292 = vmatpush1.msra.mxu0 0.0
    %293 = vmatprep.subr.mxu0 0.0
    %294 = vmatpush1.msra.mxu0 0.0
    %295 = vmatprep.subr.mxu0 0.0
    %296 = vmatpush1.msra.mxu0 %v258
    %297 = vmatprep.subr.mxu0 0.0
    %298 = vmatpush1.msra.mxu0 %v257
    %299 = vmatprep.subr.mxu0 0.0
    %300 = vmatpush1.msra.mxu0 %v256
    %301 = vmatprep.subr.mxu0 0.0
    %302 = vmatpush1.msra.mxu0 %v255
    %303 = vmatprep.subr.mxu0 0.0
    %304 = vmatpush2.msra.mxu0 0.0
    %305 = vmatprep.subr.mxu0 0.0
    %306 = vmatpush2.msra.mxu0 0.0
    %307 = vmatprep.subr.mxu0 0.0
    %308 = vmatpush2.msra.mxu0 0.0
    %309 = vmatprep.subr.mxu0 0.0
    %310 = vmatpush2.msra.mxu0 0.0
    %311 = vmatprep.subr.mxu0 0.0
    %312 = vmatpush2.msra.mxu0 0.0
    %313 = vmatprep.subr.mxu0 0.0
    %314 = vmatpush2.msra.mxu0 0.0
    %315 = vmatprep.subr.mxu0 0.0
    %316 = vmatpush2.msra.mxu0 0.0
    %317 = vmatprep.subr.mxu0 0.0
    %318 = vmatpush2.msra.mxu0 0.0
    %319 = vmatprep.subr.mxu0 0.0
    %320 = vmatpush2.msra.mxu0 0.0
    %321 = vmatprep.subr.mxu0 0.0
    %322 = vmatpush2.msra.mxu0 0.0
    %323 = vmatprep.subr.mxu0 0.0
    %324 = vmatpush2.msra.mxu0 0.0
    %325 = vmatprep.subr.mxu0 0.0
    %326 = vmatpush2.msra.mxu0 0.0
    %327 = vmatprep.subr.mxu0 0.0
    %328 = vmatpush2.msra.mxu0 0.0
    %329 = vmatprep.subr.mxu0 0.0
    %330 = vmatpush2.msra.mxu0 0.0
    %331 = vmatprep.subr.mxu0 0.0
    %332 = vmatpush2.msra.mxu0 0.0
    %333 = vmatprep.subr.mxu0 0.0
    %334 = vmatpush2.msra.mxu0 0.0
    %335 = vmatprep.mubr.f32.mxu0 0.0
    %336 = vmatmul.mubr.f32.gmra.mxu0 %v260
    %v337 = vpop.f32.mrf.mxu0
    %v338 = vadd.f32 0.0, %v337
    %v339 = vpop.f32.mrf.mxu0
    %340 = vmatprep.mubr.f32.mxu0 0.0
    %341 = vmatmul.mubr.f32.gmra.mxu0 %v263
    %v342 = vpop.f32.mrf.mxu0
    %v343 = vadd.f32 0.0, %v342
    %v344 = vpop.f32.mrf.mxu0
    %345 = vmatprep.mubr.f32.mxu0 0.0
    %346 = vmatmul.mubr.f32.gmra.mxu0 %v266
    %v347 = vpop.f32.mrf.mxu0
    %v348 = vadd.f32 0.0, %v347
    %v349 = vpop.f32.mrf.mxu0
    %350 = vmatprep.mubr.f32.mxu0 0.0
    %351 = vmatmul.mubr.f32.gmra.mxu0 %v269
    %v352 = vpop.f32.mrf.mxu0
    %v353 = vadd.f32 0.0, %v352
    %v354 = vpop.f32.mrf.mxu0
    %355 = vdwg.mxu0
    %s356 = scalar_lea.vmem %s4, 1
    %v357 = vld [vmem:[%s356] sm:$0x1]
    %v359 = vlaneseq
    %v360 = vshrl.u32 %v359, 7
    %v361 = vsub.s32 0, %v360
    %v362 = vrot.slane %v357, %v361
    %364 = vmatprep.subr.mxu0 0.0
    %365 = vmatpush1.msra.mxu0 0.0
    %366 = vmatprep.subr.mxu0 0.0
    %367 = vmatpush1.msra.mxu0 0.0
    %368 = vmatprep.subr.mxu0 0.0
    %369 = vmatpush1.msra.mxu0 0.0
    %370 = vmatprep.subr.mxu0 0.0
    %371 = vmatpush1.msra.mxu0 0.0
    %372 = vmatprep.subr.mxu0 0.0
    %373 = vmatpush1.msra.mxu0 0.0
    %374 = vmatprep.subr.mxu0 0.0
    %375 = vmatpush1.msra.mxu0 0.0
    %376 = vmatprep.subr.mxu0 0.0
    %377 = vmatpush1.msra.mxu0 0.0
    %378 = vmatprep.subr.mxu0 0.0
    %379 = vmatpush1.msra.mxu0 0.0
    %380 = vmatprep.subr.mxu0 0.0
    %381 = vmatpush1.msra.mxu0 0.0
    %382 = vmatprep.subr.mxu0 0.0
    %383 = vmatpush1.msra.mxu0 0.0
    %384 = vmatprep.subr.mxu0 0.0
    %385 = vmatpush1.msra.mxu0 0.0
    %386 = vmatprep.subr.mxu0 0.0
    %387 = vmatpush1.msra.mxu0 0.0
    %388 = vmatprep.subr.mxu0 0.0
    %389 = vmatpush1.msra.mxu0 %v353
    %390 = vmatprep.subr.mxu0 0.0
    %391 = vmatpush1.msra.mxu0 %v348
    %392 = vmatprep.subr.mxu0 0.0
    %393 = vmatpush1.msra.mxu0 %v343
    %394 = vmatprep.subr.mxu0 0.0
    %395 = vmatpush1.msra.mxu0 %v338
    %396 = vmatprep.subr.mxu0 0.0
    %397 = vmatpush2.msra.mxu0 0.0
    %398 = vmatprep.subr.mxu0 0.0
    %399 = vmatpush2.msra.mxu0 0.0
    %400 = vmatprep.subr.mxu0 0.0
    %401 = vmatpush2.msra.mxu0 0.0
    %402 = vmatprep.subr.mxu0 0.0
    %403 = vmatpush2.msra.mxu0 0.0
    %404 = vmatprep.subr.mxu0 0.0
    %405 = vmatpush2.msra.mxu0 0.0
    %406 = vmatprep.subr.mxu0 0.0
    %407 = vmatpush2.msra.mxu0 0.0
    %408 = vmatprep.subr.mxu0 0.0
    %409 = vmatpush2.msra.mxu0 0.0
    %410 = vmatprep.subr.mxu0 0.0
    %411 = vmatpush2.msra.mxu0 0.0
    %412 = vmatprep.subr.mxu0 0.0
    %413 = vmatpush2.msra.mxu0 0.0
    %414 = vmatprep.subr.mxu0 0.0
    %415 = vmatpush2.msra.mxu0 0.0
    %416 = vmatprep.subr.mxu0 0.0
    %417 = vmatpush2.msra.mxu0 0.0
    %418 = vmatprep.subr.mxu0 0.0
    %419 = vmatpush2.msra.mxu0 0.0
    %420 = vmatprep.subr.mxu0 0.0
    %421 = vmatpush2.msra.mxu0 0.0
    %422 = vmatprep.subr.mxu0 0.0
    %423 = vmatpush2.msra.mxu0 0.0
    %424 = vmatprep.subr.mxu0 0.0
    %425 = vmatpush2.msra.mxu0 0.0
    %426 = vmatprep.subr.mxu0 0.0
    %427 = vmatpush2.msra.mxu0 0.0
    %428 = vmatprep.mubr.f32.mxu0 0.0
    %429 = vmatmul.mubr.f32.gmra.mxu0 %v154
    %v430 = vpop.f32.mrf.mxu0
    %v431 = vadd.f32 %v362, %v430
    %v432 = vpop.f32.mrf.mxu0
    %433 = vmatprep.mubr.f32.mxu0 0.0
    %434 = vmatmul.mubr.f32.gmra.mxu0 %v157
    %v435 = vpop.f32.mrf.mxu0
    %v436 = vadd.f32 %v362, %v435
    %v437 = vpop.f32.mrf.mxu0
    %438 = vmatprep.mubr.f32.mxu0 0.0
    %439 = vmatmul.mubr.f32.gmra.mxu0 %v160
    %v440 = vpop.f32.mrf.mxu0
    %v441 = vadd.f32 %v362, %v440
    %v442 = vpop.f32.mrf.mxu0
    %443 = vmatprep.mubr.f32.mxu0 0.0
    %444 = vmatmul.mubr.f32.gmra.mxu0 %v163
    %v445 = vpop.f32.mrf.mxu0
    %v446 = vadd.f32 %v362, %v445
    %v447 = vpop.f32.mrf.mxu0
    %448 = vdwg.mxu0
    %v449 = vtanh.pop %v431
    %v450 = vtanh.pop %v436
    %v451 = vtanh.pop %v441
    %v452 = vtanh.pop %v446
    %v453 = vld [vmem:[%s5] sm:$0xff]
    %v454 = vld [vmem:[%s5 + $0x8] sm:$0xff]
    %v455 = vld [vmem:[%s5 + $0x10] sm:$0xff]
    %v456 = vld [vmem:[%s5 + $0x18] sm:$0xff]
    %v457 = vmul.f32 %v449, %v453
    %v458 = vmul.f32 %v450, %v454
    %v459 = vmul.f32 %v451, %v455
    %v460 = vmul.f32 %v452, %v456
    %v461 = vadd.f32 %v457, %v36
    %v462 = vadd.f32 %v458, %v37
    %v463 = vadd.f32 %v459, %v38
    %v464 = vadd.f32 %v460, %v39
    %v465 = vld [vmem:[%s6] sm:$0xff]
    %v466 = vld [vmem:[%s6 + $0x8] sm:$0xff]
    %v467 = vld [vmem:[%s6 + $0x10] sm:$0xff]
    %v468 = vld [vmem:[%s6 + $0x18] sm:$0xff]
    %v470 = vsel %vm48, %v461, 0
    %v473 = vsel %vm48, %v462, 0
    %v476 = vsel %vm48, %v463, 0
    %v479 = vsel %vm48, %v464, 0
    %481 = vmatprep.subr.mxu0 0.0
    %482 = vmatpush1.msra.mxu0 0.0
    %483 = vmatprep.subr.mxu0 0.0
    %484 = vmatpush1.msra.mxu0 0.0
    %485 = vmatprep.subr.mxu0 0.0
    %486 = vmatpush1.msra.mxu0 0.0
    %487 = vmatprep.subr.mxu0 0.0
    %488 = vmatpush1.msra.mxu0 0.0
    %489 = vmatprep.subr.mxu0 0.0
    %490 = vmatpush1.msra.mxu0 0.0
    %491 = vmatprep.subr.mxu0 0.0
    %492 = vmatpush1.msra.mxu0 0.0
    %493 = vmatprep.subr.mxu0 0.0
    %494 = vmatpush1.msra.mxu0 0.0
    %495 = vmatprep.subr.mxu0 0.0
    %496 = vmatpush1.msra.mxu0 0.0
    %497 = vmatprep.subr.mxu0 0.0
    %498 = vmatpush1.msra.mxu0 0.0
    %499 = vmatprep.subr.mxu0 0.0
    %500 = vmatpush1.msra.mxu0 0.0
    %501 = vmatprep.subr.mxu0 0.0
    %502 = vmatpush1.msra.mxu0 0.0
    %503 = vmatprep.subr.mxu0 0.0
    %504 = vmatpush1.msra.mxu0 0.0
    %505 = vmatprep.subr.mxu0 0.0
    %506 = vmatpush1.msra.mxu0 %v468
    %507 = vmatprep.subr.mxu0 0.0
    %508 = vmatpush1.msra.mxu0 %v467
    %509 = vmatprep.subr.mxu0 0.0
    %510 = vmatpush1.msra.mxu0 %v466
    %511 = vmatprep.subr.mxu0 0.0
    %512 = vmatpush1.msra.mxu0 %v465
    %513 = vmatprep.subr.mxu0 0.0
    %514 = vmatpush2.msra.mxu0 0.0
    %515 = vmatprep.subr.mxu0 0.0
    %516 = vmatpush2.msra.mxu0 0.0
    %517 = vmatprep.subr.mxu0 0.0
    %518 = vmatpush2.msra.mxu0 0.0
    %519 = vmatprep.subr.mxu0 0.0
    %520 = vmatpush2.msra.mxu0 0.0
    %521 = vmatprep.subr.mxu0 0.0
    %522 = vmatpush2.msra.mxu0 0.0
    %523 = vmatprep.subr.mxu0 0.0
    %524 = vmatpush2.msra.mxu0 0.0
    %525 = vmatprep.subr.mxu0 0.0
    %526 = vmatpush2.msra.mxu0 0.0
    %527 = vmatprep.subr.mxu0 0.0
    %528 = vmatpush2.msra.mxu0 0.0
    %529 = vmatprep.subr.mxu0 0.0
    %530 = vmatpush2.msra.mxu0 0.0
    %531 = vmatprep.subr.mxu0 0.0
    %532 = vmatpush2.msra.mxu0 0.0
    %533 = vmatprep.subr.mxu0 0.0
    %534 = vmatpush2.msra.mxu0 0.0
    %535 = vmatprep.subr.mxu0 0.0
    %536 = vmatpush2.msra.mxu0 0.0
    %537 = vmatprep.subr.mxu0 0.0
    %538 = vmatpush2.msra.mxu0 0.0
    %539 = vmatprep.subr.mxu0 0.0
    %540 = vmatpush2.msra.mxu0 0.0
    %541 = vmatprep.subr.mxu0 0.0
    %542 = vmatpush2.msra.mxu0 0.0
    %543 = vmatprep.subr.mxu0 0.0
    %544 = vmatpush2.msra.mxu0 0.0
    %545 = vmatprep.mubr.f32.mxu0 0.0
    %546 = vmatmul.mubr.f32.gmra.mxu0 %v470
    %v547 = vpop.f32.mrf.mxu0
    %v548 = vadd.f32 0.0, %v547
    %v549 = vpop.f32.mrf.mxu0
    %550 = vmatprep.mubr.f32.mxu0 0.0
    %551 = vmatmul.mubr.f32.gmra.mxu0 %v473
    %v552 = vpop.f32.mrf.mxu0
    %v553 = vadd.f32 0.0, %v552
    %v554 = vpop.f32.mrf.mxu0
    %555 = vmatprep.mubr.f32.mxu0 0.0
    %556 = vmatmul.mubr.f32.gmra.mxu0 %v476
    %v557 = vpop.f32.mrf.mxu0
    %v558 = vadd.f32 0.0, %v557
    %v559 = vpop.f32.mrf.mxu0
    %560 = vmatprep.mubr.f32.mxu0 0.0
    %561 = vmatmul.mubr.f32.gmra.mxu0 %v479
    %v562 = vpop.f32.mrf.mxu0
    %v563 = vadd.f32 0.0, %v562
    %v564 = vpop.f32.mrf.mxu0
    %565 = vdwg.mxu0
    %v566 = vld [vmem:[%s7] sm:$0xff]
    %v567 = vld [vmem:[%s7 + $0x8] sm:$0xff]
    %v568 = vld [vmem:[%s7 + $0x10] sm:$0xff]
    %v569 = vld [vmem:[%s7 + $0x18] sm:$0xff]
    %570 = vmatprep.subr.mxu0 0.0
    %571 = vmatpush1.msra.mxu0 0.0
    %572 = vmatprep.subr.mxu0 0.0
    %573 = vmatpush1.msra.mxu0 0.0
    %574 = vmatprep.subr.mxu0 0.0
    %575 = vmatpush1.msra.mxu0 0.0
    %576 = vmatprep.subr.mxu0 0.0
    %577 = vmatpush1.msra.mxu0 0.0
    %578 = vmatprep.subr.mxu0 0.0
    %579 = vmatpush1.msra.mxu0 0.0
    %580 = vmatprep.subr.mxu0 0.0
    %581 = vmatpush1.msra.mxu0 0.0
    %582 = vmatprep.subr.mxu0 0.0
    %583 = vmatpush1.msra.mxu0 0.0
    %584 = vmatprep.subr.mxu0 0.0
    %585 = vmatpush1.msra.mxu0 0.0
    %586 = vmatprep.subr.mxu0 0.0
    %587 = vmatpush1.msra.mxu0 0.0
    %588 = vmatprep.subr.mxu0 0.0
    %589 = vmatpush1.msra.mxu0 0.0
    %590 = vmatprep.subr.mxu0 0.0
    %591 = vmatpush1.msra.mxu0 0.0
    %592 = vmatprep.subr.mxu0 0.0
    %593 = vmatpush1.msra.mxu0 0.0
    %594 = vmatprep.subr.mxu0 0.0
    %595 = vmatpush1.msra.mxu0 %v569
    %596 = vmatprep.subr.mxu0 0.0
    %597 = vmatpush1.msra.mxu0 %v568
    %598 = vmatprep.subr.mxu0 0.0
    %599 = vmatpush1.msra.mxu0 %v567
    %600 = vmatprep.subr.mxu0 0.0
    %601 = vmatpush1.msra.mxu0 %v566
    %602 = vmatprep.subr.mxu0 0.0
    %603 = vmatpush2.msra.mxu0 0.0
    %604 = vmatprep.subr.mxu0 0.0
    %605 = vmatpush2.msra.mxu0 0.0
    %606 = vmatprep.subr.mxu0 0.0
    %607 = vmatpush2.msra.mxu0 0.0
    %608 = vmatprep.subr.mxu0 0.0
    %609 = vmatpush2.msra.mxu0 0.0
    %610 = vmatprep.subr.mxu0 0.0
    %611 = vmatpush2.msra.mxu0 0.0
    %612 = vmatprep.subr.mxu0 0.0
    %613 = vmatpush2.msra.mxu0 0.0
    %614 = vmatprep.subr.mxu0 0.0
    %615 = vmatpush2.msra.mxu0 0.0
    %616 = vmatprep.subr.mxu0 0.0
    %617 = vmatpush2.msra.mxu0 0.0
    %618 = vmatprep.subr.mxu0 0.0
    %619 = vmatpush2.msra.mxu0 0.0
    %620 = vmatprep.subr.mxu0 0.0
    %621 = vmatpush2.msra.mxu0 0.0
    %622 = vmatprep.subr.mxu0 0.0
    %623 = vmatpush2.msra.mxu0 0.0
    %624 = vmatprep.subr.mxu0 0.0
    %625 = vmatpush2.msra.mxu0 0.0
    %626 = vmatprep.subr.mxu0 0.0
    %627 = vmatpush2.msra.mxu0 0.0
    %628 = vmatprep.subr.mxu0 0.0
    %629 = vmatpush2.msra.mxu0 0.0
    %630 = vmatprep.subr.mxu0 0.0
    %631 = vmatpush2.msra.mxu0 0.0
    %632 = vmatprep.subr.mxu0 0.0
    %633 = vmatpush2.msra.mxu0 0.0
    %634 = vmatprep.mubr.f32.mxu0 0.0
    %635 = vmatmul.mubr.f32.gmra.mxu0 %v470
    %v636 = vpop.f32.mrf.mxu0
    %v637 = vadd.f32 0.0, %v636
    %v638 = vpop.f32.mrf.mxu0
    %639 = vmatprep.mubr.f32.mxu0 0.0
    %640 = vmatmul.mubr.f32.gmra.mxu0 %v473
    %v641 = vpop.f32.mrf.mxu0
    %v642 = vadd.f32 0.0, %v641
    %v643 = vpop.f32.mrf.mxu0
    %644 = vmatprep.mubr.f32.mxu0 0.0
    %645 = vmatmul.mubr.f32.gmra.mxu0 %v476
    %v646 = vpop.f32.mrf.mxu0
    %v647 = vadd.f32 0.0, %v646
    %v648 = vpop.f32.mrf.mxu0
    %649 = vmatprep.mubr.f32.mxu0 0.0
    %650 = vmatmul.mubr.f32.gmra.mxu0 %v479
    %v651 = vpop.f32.mrf.mxu0
    %v652 = vadd.f32 0.0, %v651
    %v653 = vpop.f32.mrf.mxu0
    %654 = vdwg.mxu0
    %v655 = vld [vmem:[%s8] sm:$0x1]
    %v657 = vsel %vm48, %v655, 0
    %659 = vmatprep.subr.mxu0 0.0
    %660 = vmatpush1.xpose.msra.mxu0 0.0
    %661 = vmatprep.subr.mxu0 0.0
    %662 = vmatpush1.xpose.msra.mxu0 0.0
    %663 = vmatprep.subr.mxu0 0.0
    %664 = vmatpush1.xpose.msra.mxu0 0.0
    %665 = vmatprep.subr.mxu0 0.0
    %666 = vmatpush1.xpose.msra.mxu0 0.0
    %667 = vmatprep.subr.mxu0 0.0
    %668 = vmatpush1.xpose.msra.mxu0 0.0
    %669 = vmatprep.subr.mxu0 0.0
    %670 = vmatpush1.xpose.msra.mxu0 0.0
    %671 = vmatprep.subr.mxu0 0.0
    %672 = vmatpush1.xpose.msra.mxu0 0.0
    %673 = vmatprep.subr.mxu0 0.0
    %674 = vmatpush1.xpose.msra.mxu0 0.0
    %675 = vmatprep.subr.mxu0 0.0
    %676 = vmatpush1.xpose.msra.mxu0 0.0
    %677 = vmatprep.subr.mxu0 0.0
    %678 = vmatpush1.xpose.msra.mxu0 0.0
    %679 = vmatprep.subr.mxu0 0.0
    %680 = vmatpush1.xpose.msra.mxu0 0.0
    %681 = vmatprep.subr.mxu0 0.0
    %682 = vmatpush1.xpose.msra.mxu0 0.0
    %683 = vmatprep.subr.mxu0 0.0
    %684 = vmatpush1.xpose.msra.mxu0 %v479
    %685 = vmatprep.subr.mxu0 0.0
    %686 = vmatpush1.xpose.msra.mxu0 %v476
    %687 = vmatprep.subr.mxu0 0.0
    %688 = vmatpush1.xpose.msra.mxu0 %v473
    %689 = vmatprep.subr.mxu0 0.0
    %690 = vmatpush1.xpose.msra.mxu0 %v470
    %691 = vmatprep.subr.mxu0 0.0
    %692 = vmatpush2.xpose.msra.mxu0 0.0
    %693 = vmatprep.subr.mxu0 0.0
    %694 = vmatpush2.xpose.msra.mxu0 0.0
    %695 = vmatprep.subr.mxu0 0.0
    %696 = vmatpush2.xpose.msra.mxu0 0.0
    %697 = vmatprep.subr.mxu0 0.0
    %698 = vmatpush2.xpose.msra.mxu0 0.0
    %699 = vmatprep.subr.mxu0 0.0
    %700 = vmatpush2.xpose.msra.mxu0 0.0
    %701 = vmatprep.subr.mxu0 0.0
    %702 = vmatpush2.xpose.msra.mxu0 0.0
    %703 = vmatprep.subr.mxu0 0.0
    %704 = vmatpush2.xpose.msra.mxu0 0.0
    %705 = vmatprep.subr.mxu0 0.0
    %706 = vmatpush2.xpose.msra.mxu0 0.0
    %707 = vmatprep.subr.mxu0 0.0
    %708 = vmatpush2.xpose.msra.mxu0 0.0
    %709 = vmatprep.subr.mxu0 0.0
    %710 = vmatpush2.xpose.msra.mxu0 0.0
    %711 = vmatprep.subr.mxu0 0.0
    %712 = vmatpush2.xpose.msra.mxu0 0.0
    %713 = vmatprep.subr.mxu0 0.0
    %714 = vmatpush2.xpose.msra.mxu0 0.0
    %715 = vmatprep.subr.mxu0 0.0
    %716 = vmatpush2.xpose.msra.mxu0 0.0
    %717 = vmatprep.subr.mxu0 0.0
    %718 = vmatpush2.xpose.msra.mxu0 0.0
    %719 = vmatprep.subr.mxu0 0.0
    %720 = vmatpush2.xpose.msra.mxu0 0.0
    %721 = vmatprep.subr.mxu0 0.0
    %722 = vmatpush2.xpose.msra.mxu0 0.0
    %723 = vmatprep.mubr.f32.mxu0 0.0
    %724 = vmatmul.mubr.f32.gmra.mxu0 %v657
    %v725 = vpop.f32.mrf.mxu0
    %v726 = vadd.f32 0.0, %v725
    %v727 = vpop.f32.mrf.mxu0
    %728 = vdwg.mxu0
    %730 = vset.pattern.permute.xlu0 0
    %731 = vperm.xlu0 %730, %v637
    %v732 = vpop.permute.xlu0 %731
    %735 = vset.pattern.permute.xlu0 0
    %736 = vperm.xlu0 %735, %v642
    %v737 = vpop.permute.xlu0 %736
    %740 = vset.pattern.permute.xlu0 0
    %741 = vperm.xlu0 %740, %v647
    %v742 = vpop.permute.xlu0 %741
    %745 = vset.pattern.permute.xlu0 0
    %746 = vperm.xlu0 %745, %v652
    %v747 = vpop.permute.xlu0 %746
    %v749 = vlaneseq
    %v750 = vshrl.u32 %v749, 7
    %v751 = vsub.s32 0, %v750
    %v752 = vrot.slane %v726, %v751
    %v753 = vadd.f32 %v732, %v752
    %v754 = vadd.f32 %v737, %v752
    %v755 = vadd.f32 %v742, %v752
    %v756 = vadd.f32 %v747, %v752
    %vm757 = vcmp.gt.f32.partialorder %v753, 0.0
    %vm758 = vcmp.gt.f32.partialorder %v754, 0.0
    %vm759 = vcmp.gt.f32.partialorder %v755, 0.0
    %vm760 = vcmp.gt.f32.partialorder %v756, 0.0
    %v761 = vmul.f32 %v753, 0.2
    %v762 = vmul.f32 %v754, 0.2
    %v763 = vmul.f32 %v755, 0.2
    %v764 = vmul.f32 %v756, 0.2
    %v765 = vsel %vm757, %v753, %v761
    %v766 = vsel %vm758, %v754, %v762
    %v767 = vsel %vm759, %v755, %v763
    %v768 = vsel %vm760, %v756, %v764
    %v769 = vld [vmem:[%s2] sm:$0xff]
    %v770 = vld [vmem:[%s2 + $0x8] sm:$0xff]
    %v771 = vld [vmem:[%s2 + $0x10] sm:$0xff]
    %v772 = vld [vmem:[%s2 + $0x18] sm:$0xff]
    %vm773 = vcmp.gt.f32.partialorder %v769, 0.0
    %vm774 = vcmp.gt.f32.partialorder %v770, 0.0
    %vm775 = vcmp.gt.f32.partialorder %v771, 0.0
    %vm776 = vcmp.gt.f32.partialorder %v772, 0.0
    %v777 = vsel %vm773, %v765, -1e+09
    %v778 = vsel %vm774, %v766, -1e+09
    %v779 = vsel %vm775, %v767, -1e+09
    %v780 = vsel %vm776, %v768, -1e+09
    %v781 = vsel %vm48, %v777, -inf
    %782 = vmax.xlane.f32.xlu0 %v781
    %v783 = vpop.xlane.xlu0 %782
    %v784 = vsel %vm48, %v778, -inf
    %785 = vmax.xlane.f32.xlu0 %v784
    %v786 = vpop.xlane.xlu0 %785
    %v787 = vsel %vm48, %v779, -inf
    %788 = vmax.xlane.f32.xlu0 %v787
    %v789 = vpop.xlane.xlu0 %788
    %v790 = vsel %vm48, %v780, -inf
    %791 = vmax.xlane.f32.xlu0 %v790
    %v792 = vpop.xlane.xlu0 %791
    %v793 = vsub.f32 %v777, %v783
    %v794 = vsub.f32 %v778, %v786
    %v795 = vsub.f32 %v779, %v789
    %v796 = vsub.f32 %v780, %v792
    %v797 = vmul.f32 %v793, 1.442695
    %v798 = vpow.pop %v797
    %v799 = vmul.f32 %v794, 1.442695
    %v800 = vpow.pop %v799
    %v801 = vmul.f32 %v795, 1.442695
    %v802 = vpow.pop %v801
    %v803 = vmul.f32 %v796, 1.442695
    %v804 = vpow.pop %v803
    %v805 = vsel %vm48, %v798, 0.0
    %806 = vadd.xlane.f32.xlu0 %v805
    %v807 = vpop.xlane.xlu0 %806
    %v808 = vsel %vm48, %v800, 0.0
    %809 = vadd.xlane.f32.xlu0 %v808
    %v810 = vpop.xlane.xlu0 %809
    %v811 = vsel %vm48, %v802, 0.0
    %812 = vadd.xlane.f32.xlu0 %v811
    %v813 = vpop.xlane.xlu0 %812
    %v814 = vsel %vm48, %v804, 0.0
    %815 = vadd.xlane.f32.xlu0 %v814
    %v816 = vpop.xlane.xlu0 %815
    %v817 = vrcp.pop %v807
    %v818 = vmul.f32 %v798, %v817
    %v819 = vrcp.pop %v810
    %v820 = vmul.f32 %v800, %v819
    %v821 = vrcp.pop %v813
    %v822 = vmul.f32 %v802, %v821
    %v823 = vrcp.pop %v816
    %v824 = vmul.f32 %v804, %v823
    %v825 = vld [vmem:[%s9] sm:$0x1]
    %v827 = vlaneseq
    %v828 = vshrl.u32 %v827, 7
    %v829 = vsub.s32 0, %v828
    %v830 = vrot.slane %v825, %v829
    %v833 = vsel %vm48, %v818, 0
    %v836 = vsel %vm48, %v820, 0
    %v839 = vsel %vm48, %v822, 0
    %v842 = vsel %vm48, %v824, 0
    %844 = vmatprep.subr.mxu0 0.0
    %845 = vmatpush1.msra.mxu0 0.0
    %846 = vmatprep.subr.mxu0 0.0
    %847 = vmatpush1.msra.mxu0 0.0
    %848 = vmatprep.subr.mxu0 0.0
    %849 = vmatpush1.msra.mxu0 0.0
    %850 = vmatprep.subr.mxu0 0.0
    %851 = vmatpush1.msra.mxu0 0.0
    %852 = vmatprep.subr.mxu0 0.0
    %853 = vmatpush1.msra.mxu0 0.0
    %854 = vmatprep.subr.mxu0 0.0
    %855 = vmatpush1.msra.mxu0 0.0
    %856 = vmatprep.subr.mxu0 0.0
    %857 = vmatpush1.msra.mxu0 0.0
    %858 = vmatprep.subr.mxu0 0.0
    %859 = vmatpush1.msra.mxu0 0.0
    %860 = vmatprep.subr.mxu0 0.0
    %861 = vmatpush1.msra.mxu0 0.0
    %862 = vmatprep.subr.mxu0 0.0
    %863 = vmatpush1.msra.mxu0 0.0
    %864 = vmatprep.subr.mxu0 0.0
    %865 = vmatpush1.msra.mxu0 0.0
    %866 = vmatprep.subr.mxu0 0.0
    %867 = vmatpush1.msra.mxu0 0.0
    %868 = vmatprep.subr.mxu0 0.0
    %869 = vmatpush1.msra.mxu0 %v563
    %870 = vmatprep.subr.mxu0 0.0
    %871 = vmatpush1.msra.mxu0 %v558
    %872 = vmatprep.subr.mxu0 0.0
    %873 = vmatpush1.msra.mxu0 %v553
    %874 = vmatprep.subr.mxu0 0.0
    %875 = vmatpush1.msra.mxu0 %v548
    %876 = vmatprep.subr.mxu0 0.0
    %877 = vmatpush2.msra.mxu0 0.0
    %878 = vmatprep.subr.mxu0 0.0
    %879 = vmatpush2.msra.mxu0 0.0
    %880 = vmatprep.subr.mxu0 0.0
    %881 = vmatpush2.msra.mxu0 0.0
    %882 = vmatprep.subr.mxu0 0.0
    %883 = vmatpush2.msra.mxu0 0.0
    %884 = vmatprep.subr.mxu0 0.0
    %885 = vmatpush2.msra.mxu0 0.0
    %886 = vmatprep.subr.mxu0 0.0
    %887 = vmatpush2.msra.mxu0 0.0
    %888 = vmatprep.subr.mxu0 0.0
    %889 = vmatpush2.msra.mxu0 0.0
    %890 = vmatprep.subr.mxu0 0.0
    %891 = vmatpush2.msra.mxu0 0.0
    %892 = vmatprep.subr.mxu0 0.0
    %893 = vmatpush2.msra.mxu0 0.0
    %894 = vmatprep.subr.mxu0 0.0
    %895 = vmatpush2.msra.mxu0 0.0
    %896 = vmatprep.subr.mxu0 0.0
    %897 = vmatpush2.msra.mxu0 0.0
    %898 = vmatprep.subr.mxu0 0.0
    %899 = vmatpush2.msra.mxu0 0.0
    %900 = vmatprep.subr.mxu0 0.0
    %901 = vmatpush2.msra.mxu0 0.0
    %902 = vmatprep.subr.mxu0 0.0
    %903 = vmatpush2.msra.mxu0 0.0
    %904 = vmatprep.subr.mxu0 0.0
    %905 = vmatpush2.msra.mxu0 0.0
    %906 = vmatprep.subr.mxu0 0.0
    %907 = vmatpush2.msra.mxu0 0.0
    %908 = vmatprep.mubr.f32.mxu0 0.0
    %909 = vmatmul.mubr.f32.gmra.mxu0 %v833
    %v910 = vpop.f32.mrf.mxu0
    %v911 = vadd.f32 %v830, %v910
    %v912 = vpop.f32.mrf.mxu0
    %913 = vmatprep.mubr.f32.mxu0 0.0
    %914 = vmatmul.mubr.f32.gmra.mxu0 %v836
    %v915 = vpop.f32.mrf.mxu0
    %v916 = vadd.f32 %v830, %v915
    %v917 = vpop.f32.mrf.mxu0
    %918 = vmatprep.mubr.f32.mxu0 0.0
    %919 = vmatmul.mubr.f32.gmra.mxu0 %v839
    %v920 = vpop.f32.mrf.mxu0
    %v921 = vadd.f32 %v830, %v920
    %v922 = vpop.f32.mrf.mxu0
    %923 = vmatprep.mubr.f32.mxu0 0.0
    %924 = vmatmul.mubr.f32.gmra.mxu0 %v842
    %v925 = vpop.f32.mrf.mxu0
    %v926 = vadd.f32 %v830, %v925
    %v927 = vpop.f32.mrf.mxu0
    %928 = vdwg.mxu0
    %v929 = vmax.f32 %v911, 0.0
    %v930 = vmax.f32 %v916, 0.0
    %v931 = vmax.f32 %v921, 0.0
    %v932 = vmax.f32 %v926, 0.0
    %933 = vst.msk [vmem:[#allocation2] sm:$0xff] %vm48, %v929
    %934 = vst.msk [vmem:[#allocation2 + $0x8] sm:$0xff] %vm48, %v930
    %935 = vst.msk [vmem:[#allocation2 + $0x10] sm:$0xff] %vm48, %v931
    %936 = vst.msk [vmem:[#allocation2 + $0x18] sm:$0xff] %vm48, %v932
    // Predicated region
    $region42: #{graph_layer_forward.1} parent=1 // pred_check
      _
    $region43: #{graph_layer_forward.1} parent=1 // pred_check_branch
      %938 = sbr.rel (0) target = $region45
    $region44: #{graph_layer_forward.1} parent=1 // pred_region
      %s940 = ssub.s32 512, 512
      %941 = vsyncadd [#allocation3], %s940
      %s942 = sshll.u32 [#allocation2], 4
      %s943 = int_to_ptr.vmem [resolvable:$true] %s942
      %948 = dma.vmem_to_hbm [thread:$0]  %s943, 512, %s10, [#allocation3], 128, 128, 8
    $region45: #{graph_layer_forward.1} parent=1 // pred_fallthru
      _
    // Predicated region
    $region46: #{graph_layer_forward.1} parent=1 // pred_check
      _
    $region47: #{graph_layer_forward.1} parent=1 // pred_check_branch
      %950 = sbr.rel (0) target = $region49
    $region48: #{graph_layer_forward.1} parent=1 // pred_region
      %951 = dma.done [#allocation3], 512
    $region49: #{graph_layer_forward.1} parent=1 // pred_fallthru
      _
    %952 = vsyncpa [#allocation3], 1

</llo_original>
